<compile_context>
chip_gen: v7x
topology: tpu7x:2x2x1
jax: 0.10.0
libtpu: 0.0.40
codegen_flags: <defaults>
</compile_context>

<pallas_src>
import jax
import jax.numpy as jnp
import numpy as np
from jax.experimental import pallas as pl
from jax.experimental.pallas import tpu as pltpu


def encoder_kernel(x_ref, w1_ref, b1_ref, wh_ref, bh_ref, mask_ref, eps_ref, out_ref):
    # --- MLP (depth = 1): Linear -> ReLU -> Dropout ---
    # bf16 operands on the MXU, f32 accumulation.
    h = jnp.dot(x_ref[...], w1_ref[...], preferred_element_type=jnp.float32) + b1_ref[...]
    h = jnp.maximum(h, 0.0)            # ReLU
    h = h * mask_ref[...]              # inverted dropout (mask pre-scaled by 1/(1-p))

    # --- fused heads: one matmul producing [loc | log_scale] on the lane axis ---
    heads = jnp.dot(h.astype(wh_ref.dtype), wh_ref[...],
                    preferred_element_type=jnp.float32) + bh_ref[...]
    C = heads.shape[-1] // 2
    loc = heads[:, :C]
    scale = jnp.exp(heads[:, C:])      # EUP transcendental

    # --- reparameterization ---
    code = loc + eps_ref[...] * scale

    # Single lane-dense output slab: [code | loc | scale]  (one unmasked store path
    # instead of three narrow masked stores + three writeback DMAs).
    out_ref[...] = jnp.concatenate([code, loc, scale], axis=-1).astype(out_ref.dtype)


def encoder_forward(x_flat, params, dropout_mask, eps):
    """x_flat: (B, D_in) f32.  Returns (code, loc, scale), each (B, code_size) f32."""
    B, D_in = x_flat.shape
    H = params["w1"].shape[1]
    C = params["w_loc"].shape[1]

    # bf16 matmul operands (accumulation stays f32 inside the kernel).
    x_bf = x_flat.astype(jnp.bfloat16)
    w1_bf = params["w1"].astype(jnp.bfloat16)
    # Fuse the two heads: [w_loc | w_log_scale] -> (H, 2C), biases -> (1, 2C).
    w_heads = jnp.concatenate(
        [params["w_loc"], params["w_log_scale"]], axis=1).astype(jnp.bfloat16)
    b_heads = jnp.concatenate([params["b_loc"], params["b_log_scale"]], axis=1)

    # Batch tiling: whole batch per step for tiny B; multiples of 8 once B grows.
    TB = B if B <= 128 else 128
    grid = (pl.cdiv(B, TB),)

    cost = pl.CostEstimate(
        flops=2 * B * (D_in * H + H * 2 * C),
        transcendentals=B * C,
        bytes_accessed=(x_bf.size * 2 + w1_bf.size * 2 + w_heads.size * 2
                        + params["b1"].size * 4 + b_heads.size * 4
                        + dropout_mask.size * 4 + eps.size * 4
                        + B * 3 * C * 4),
    )

    out = pl.pallas_call(
        encoder_kernel,
        out_shape=jax.ShapeDtypeStruct((B, 3 * C), jnp.float32),
        grid=grid,
        in_specs=[
            pl.BlockSpec((TB, D_in), lambda i: (i, 0)),      # x
            pl.BlockSpec((D_in, H), lambda i: (0, 0)),       # w1 (resident)
            pl.BlockSpec((1, H), lambda i: (0, 0)),          # b1
            pl.BlockSpec((H, 2 * C), lambda i: (0, 0)),      # fused head weights
            pl.BlockSpec((1, 2 * C), lambda i: (0, 0)),      # fused head biases
            pl.BlockSpec((TB, H), lambda i: (i, 0)),         # dropout mask
            pl.BlockSpec((TB, C), lambda i: (i, 0)),         # eps
        ],
        out_specs=pl.BlockSpec((TB, 3 * C), lambda i: (i, 0)),
        compiler_params=pltpu.CompilerParams(
            dimension_semantics=("parallel",)),               # v7x: shard batch over 2 TCs
        cost_estimate=cost,
    )(x_bf, w1_bf, params["b1"], w_heads, b_heads, dropout_mask, eps)

    code = out[:, :C]
    loc = out[:, C:2 * C]
    scale = out[:, 2 * C:]
    return code, loc, scale


def init_params(key, input_size, code_size, hidden_size):
    """Deterministic synthetic parameters (weights stored as (in, out))."""
    ks = jax.random.split(key, 6)

    def lin(kw, kb, fan_in, fan_out):
        bound = 1.0 / np.sqrt(fan_in)
        w = jax.random.uniform(kw, (fan_in, fan_out), jnp.float32, -bound, bound)
        b = jax.random.uniform(kb, (1, fan_out), jnp.float32, -bound, bound)
        return w, b

    w1, b1 = lin(ks[0], ks[1], input_size, hidden_size)
    wl, bl = lin(ks[2], ks[3], hidden_size, code_size)
    ws, bs = lin(ks[4], ks[5], hidden_size, code_size)
    return {
        "w1": w1, "b1": b1,
        "w_loc": wl, "b_loc": bl,
        "w_log_scale": ws, "b_log_scale": bs,
    }


def reference_forward(x_flat, params, dropout_mask, eps):
    """Pure-JAX f32 reference mirroring the PyTorch forward (for correctness check)."""
    h = jnp.maximum(x_flat @ params["w1"] + params["b1"], 0.0) * dropout_mask
    loc = h @ params["w_loc"] + params["b_loc"]
    scale = jnp.exp(h @ params["w_log_scale"] + params["b_log_scale"])
    code = loc + eps * scale
    return code, loc, scale


if __name__ == "__main__":
    # Small shapes consistent with the module: image-like input flattened by forward().
    B, Cc, Hh, Ww = 2, 4, 16, 16
    input_size = Cc * Hh * Ww       # 1024
    hidden_size = 32
    code_size = 16
    dropout_p = 0.5                 # nn.Dropout default in the module signature

    root = jax.random.PRNGKey(0)
    k_x, k_params, k_mask, k_eps = jax.random.split(root, 4)

    x = jax.random.normal(k_x, (B, Cc, Hh, Ww), jnp.float32)
    x_flat = x.reshape(B, -1)       # == torch x.view(x.size(0), -1)

    params = init_params(k_params, input_size, code_size, hidden_size)

    # Training-mode dropout mask (pre-scaled inverted dropout) and reparameterization noise.
    keep = jax.random.bernoulli(k_mask, 1.0 - dropout_p, (B, hidden_size))
    dropout_mask = keep.astype(jnp.float32) / (1.0 - dropout_p)
    eps = jax.random.normal(k_eps, (B, code_size), jnp.float32)

    code, loc, scale = encoder_forward(x_flat, params, dropout_mask, eps)
    jax.block_until_ready((code, loc, scale))

    # f32 reference; tolerance loosened because the kernel uses bf16 MXU operands
    # (with f32 accumulation).
    code_r, loc_r, scale_r = reference_forward(x_flat, params, dropout_mask, eps)
    np.testing.assert_allclose(np.asarray(code), np.asarray(code_r), rtol=2e-2, atol=2e-2)
    np.testing.assert_allclose(np.asarray(loc), np.asarray(loc_r), rtol=2e-2, atol=2e-2)
    np.testing.assert_allclose(np.asarray(scale), np.asarray(scale_r), rtol=2e-2, atol=2e-2)

    print("KERNEL_OK")
</pallas_src>

<mosaic_0001>
module attributes {stable_mosaic.version = 11 : i64} {
  func.func @encoder_kernel(%arg0: i32, %arg1: memref<2x1024xbf16, #tpu.memory_space<vmem>>, %arg2: memref<1024x32xbf16, #tpu.memory_space<vmem>>, %arg3: memref<1x32xf32, #tpu.memory_space<vmem>>, %arg4: memref<32x32xbf16, #tpu.memory_space<vmem>>, %arg5: memref<1x32xf32, #tpu.memory_space<vmem>>, %arg6: memref<2x32xf32, #tpu.memory_space<vmem>>, %arg7: memref<2x16xf32, #tpu.memory_space<vmem>>, %arg8: memref<2x48xf32, #tpu.memory_space<vmem>>) attributes {dimension_semantics = [#tpu.dimension_semantics<parallel>], iteration_bounds = array<i64: 1>, scalar_prefetch = 0 : i64, scratch_operands = 0 : i64, tpu.core_type = #tpu.core_type<tc>, window_params = [{transform_indices = @transform_0, window_bounds = array<i64: 2, 1024>}, {pipeline_mode = #tpu.pipeline_mode<synchronous>, transform_indices = @transform_1, window_bounds = array<i64: 1024, 32>}, {pipeline_mode = #tpu.pipeline_mode<synchronous>, transform_indices = @transform_2, window_bounds = array<i64: 1, 32>}, {pipeline_mode = #tpu.pipeline_mode<synchronous>, transform_indices = @transform_3, window_bounds = array<i64: 32, 32>}, {pipeline_mode = #tpu.pipeline_mode<synchronous>, transform_indices = @transform_4, window_bounds = array<i64: 1, 32>}, {transform_indices = @transform_5, window_bounds = array<i64: 2, 32>}, {transform_indices = @transform_6, window_bounds = array<i64: 2, 16>}, {transform_indices = @transform_7, window_bounds = array<i64: 2, 48>}]} {
    %c0 = arith.constant 0 : index
    %c0_0 = arith.constant 0 : index
    %0 = vector.load %arg1[%c0, %c0_0] : memref<2x1024xbf16, #tpu.memory_space<vmem>>, vector<2x1024xbf16>
    %c0_1 = arith.constant 0 : index
    %c0_2 = arith.constant 0 : index
    %1 = vector.load %arg2[%c0_1, %c0_2] : memref<1024x32xbf16, #tpu.memory_space<vmem>>, vector<1024x32xbf16>
    %cst = arith.constant dense<0.000000e+00> : vector<2x32xf32>
    %2 = tpu.matmul %0, %1, %cst {dimension_numbers = #tpu.dot_dimension_numbers<[1], [0], [0], [1], [0, 0, 1, 1], [], []>} : vector<2x1024xbf16>, vector<1024x32xbf16>, vector<2x32xf32> -> vector<2x32xf32>
    %c0_3 = arith.constant 0 : index
    %c0_4 = arith.constant 0 : index
    %3 = vector.load %arg3[%c0_3, %c0_4] : memref<1x32xf32, #tpu.memory_space<vmem>>, vector<1x32xf32>
    %4 = vector.broadcast %3 : vector<1x32xf32> to vector<2x32xf32>
    %5 = arith.addf %2, %4 : vector<2x32xf32>
    %cst_5 = arith.constant 0.000000e+00 : f32
    %6 = vector.broadcast %cst_5 : f32 to vector<2x32xf32>
    %7 = arith.maximumf %5, %6 : vector<2x32xf32>
    %c0_6 = arith.constant 0 : index
    %c0_7 = arith.constant 0 : index
    %8 = vector.load %arg6[%c0_6, %c0_7] : memref<2x32xf32, #tpu.memory_space<vmem>>, vector<2x32xf32>
    %9 = arith.mulf %7, %8 : vector<2x32xf32>
    %10 = arith.truncf %9 : vector<2x32xf32> to vector<2x32xbf16>
    %c0_8 = arith.constant 0 : index
    %c0_9 = arith.constant 0 : index
    %11 = vector.load %arg4[%c0_8, %c0_9] : memref<32x32xbf16, #tpu.memory_space<vmem>>, vector<32x32xbf16>
    %cst_10 = arith.constant dense<0.000000e+00> : vector<2x32xf32>
    %12 = tpu.matmul %10, %11, %cst_10 {dimension_numbers = #tpu.dot_dimension_numbers<[1], [0], [0], [1], [0, 0, 1, 1], [], []>} : vector<2x32xbf16>, vector<32x32xbf16>, vector<2x32xf32> -> vector<2x32xf32>
    %c0_11 = arith.constant 0 : index
    %c0_12 = arith.constant 0 : index
    %13 = vector.load %arg5[%c0_11, %c0_12] : memref<1x32xf32, #tpu.memory_space<vmem>>, vector<1x32xf32>
    %14 = vector.broadcast %13 : vector<1x32xf32> to vector<2x32xf32>
    %15 = arith.addf %12, %14 : vector<2x32xf32>
    %16 = vector.extract_strided_slice %15 {offsets = [0, 0], sizes = [2, 16], strides = [1, 1]} : vector<2x32xf32> to vector<2x16xf32>
    %17 = vector.extract_strided_slice %15 {offsets = [0, 16], sizes = [2, 16], strides = [1, 1]} : vector<2x32xf32> to vector<2x16xf32>
    %18 = math.exp %17 : vector<2x16xf32>
    %c0_13 = arith.constant 0 : index
    %c0_14 = arith.constant 0 : index
    %19 = vector.load %arg7[%c0_13, %c0_14] : memref<2x16xf32, #tpu.memory_space<vmem>>, vector<2x16xf32>
    %20 = arith.mulf %19, %18 : vector<2x16xf32>
    %21 = arith.addf %16, %20 : vector<2x16xf32>
    %22 = tpu.concatenate %21, %16, %18 in 1 : vector<2x16xf32>, vector<2x16xf32>, vector<2x16xf32> -> vector<2x48xf32>
    %c0_15 = arith.constant 0 : index
    %c0_16 = arith.constant 0 : index
    %23 = vector.load %arg8[%c0_15, %c0_16] : memref<2x48xf32, #tpu.memory_space<vmem>>, vector<2x48xf32>
    tpu.vector_store %arg8[%c0_15, %c0_16], %22 {strides = array<i32>} : memref<2x48xf32, #tpu.memory_space<vmem>>, vector<2x48xf32>,
    return
  }
  func.func @transform_0(%arg0: i32) -> (i32, i32) {
    %c0_i32 = arith.constant 0 : i32
    %c0_i32_0 = arith.constant 0 : i32
    return %arg0, %c0_i32 : i32, i32
  }
  func.func @transform_1(%arg0: i32) -> (i32, i32) {
    %c0_i32 = arith.constant 0 : i32
    %c0_i32_0 = arith.constant 0 : i32
    %c0_i32_1 = arith.constant 0 : i32
    return %c0_i32, %c0_i32_0 : i32, i32
  }
  func.func @transform_2(%arg0: i32) -> (i32, i32) {
    %c0_i32 = arith.constant 0 : i32
    %c0_i32_0 = arith.constant 0 : i32
    %c0_i32_1 = arith.constant 0 : i32
    return %c0_i32, %c0_i32_0 : i32, i32
  }
  func.func @transform_3(%arg0: i32) -> (i32, i32) {
    %c0_i32 = arith.constant 0 : i32
    %c0_i32_0 = arith.constant 0 : i32
    %c0_i32_1 = arith.constant 0 : i32
    return %c0_i32, %c0_i32_0 : i32, i32
  }
  func.func @transform_4(%arg0: i32) -> (i32, i32) {
    %c0_i32 = arith.constant 0 : i32
    %c0_i32_0 = arith.constant 0 : i32
    %c0_i32_1 = arith.constant 0 : i32
    return %c0_i32, %c0_i32_0 : i32, i32
  }
  func.func @transform_5(%arg0: i32) -> (i32, i32) {
    %c0_i32 = arith.constant 0 : i32
    %c0_i32_0 = arith.constant 0 : i32
    return %arg0, %c0_i32 : i32, i32
  }
  func.func @transform_6(%arg0: i32) -> (i32, i32) {
    %c0_i32 = arith.constant 0 : i32
    %c0_i32_0 = arith.constant 0 : i32
    return %arg0, %c0_i32 : i32, i32
  }
  func.func @transform_7(%arg0: i32) -> (i32, i32) {
    %c0_i32 = arith.constant 0 : i32
    %c0_i32_0 = arith.constant 0 : i32
    return %arg0, %c0_i32 : i32, i32
  }
}

</mosaic_0001>

<llo_original>
// kernel: tpu_custom_call.1
$region0: #{tpu_custom_call.1}
  #allocation0 [shape = 'u32[]', space=smem, size = 0x4, offset = 0x4, fixed_abs, tag = 'smem constant byte address 0x4 - core index']
  #allocation1 [shape = 'u32[144,128]{1,0:T(1,128)}', space=vmem, size = 0x12000, scoped, tag = 'internal scratch']
  %s0 = inlined_call_operand.vmem [shape: bf16[2,1024], index: 0, kind: input, shape index: {}]
  %s1 = inlined_call_operand.vmem [shape: bf16[1024,32], index: 1, kind: input, shape index: {}]
  %s2 = inlined_call_operand.vmem [shape: f32[1,32], index: 2, kind: input, shape index: {}]
  %s3 = inlined_call_operand.vmem [shape: bf16[32,32], index: 3, kind: input, shape index: {}]
  %s4 = inlined_call_operand.vmem [shape: f32[1,32], index: 4, kind: input, shape index: {}]
  %s5 = inlined_call_operand.vmem [shape: f32[2,32], index: 5, kind: input, shape index: {}]
  %s6 = inlined_call_operand.vmem [shape: f32[2,16], index: 6, kind: input, shape index: {}]
  %s7 = inlined_call_operand.hbm [shape: f32[2,48], index: 7, kind: output, shape index: {}]
  %s8 = sld [smem:[#allocation0]]
  $region38: #{tpu_custom_call.1} parent=0
    _
  %s10 = ssub.s32 1, %s8
  %s11 = scalar_select 0, %s10, %s8
  $region1: #{tpu_custom_call.1} parent=0
    #allocation2 [shape = 'u8[1024]{0}', space=vmem, size = 0x400, scoped, tag = 'output window, operand 0, single buffered']
    #allocation3 [shape = 's32[1]{0}', space=sflag, size = 0x4, scoped, tag = 'scoped memory for tpu_custom_call.1']
    %12 = vsyncpa [#allocation3], 0
    // Predicated region
    $region2: #{tpu_custom_call.1} parent=1 // pred_check
      _
    $region3: #{tpu_custom_call.1} parent=1 // pred_check_branch
      %14 = sbr.rel (0) target = $region5
    $region4: #{tpu_custom_call.1} parent=1 // pred_region
      _
    $region5: #{tpu_custom_call.1} parent=1 // pred_fallthru
      _
    // Predicated region
    $region6: #{tpu_custom_call.1} parent=1 // pred_check
      _
    $region7: #{tpu_custom_call.1} parent=1 // pred_check_branch
      %16 = sbr.rel (0) target = $region9
    $region8: #{tpu_custom_call.1} parent=1 // pred_region
      _
    $region9: #{tpu_custom_call.1} parent=1 // pred_fallthru
      _
    // Predicated region
    $region10: #{tpu_custom_call.1} parent=1 // pred_check
      _
    $region11: #{tpu_custom_call.1} parent=1 // pred_check_branch
      %18 = sbr.rel (0) target = $region13
    $region12: #{tpu_custom_call.1} parent=1 // pred_region
      _
    $region13: #{tpu_custom_call.1} parent=1 // pred_fallthru
      _
    // Predicated region
    $region14: #{tpu_custom_call.1} parent=1 // pred_check
      _
    $region15: #{tpu_custom_call.1} parent=1 // pred_check_branch
      %20 = sbr.rel (0) target = $region17
    $region16: #{tpu_custom_call.1} parent=1 // pred_region
      _
    $region17: #{tpu_custom_call.1} parent=1 // pred_fallthru
      _
    // Predicated region
    $region18: #{tpu_custom_call.1} parent=1 // pred_check
      _
    $region19: #{tpu_custom_call.1} parent=1 // pred_check_branch
      %22 = sbr.rel (0) target = $region21
    $region20: #{tpu_custom_call.1} parent=1 // pred_region
      _
    $region21: #{tpu_custom_call.1} parent=1 // pred_fallthru
      _
    // Predicated region
    $region22: #{tpu_custom_call.1} parent=1 // pred_check
      _
    $region23: #{tpu_custom_call.1} parent=1 // pred_check_branch
      %24 = sbr.rel (0) target = $region25
    $region24: #{tpu_custom_call.1} parent=1 // pred_region
      _
    $region25: #{tpu_custom_call.1} parent=1 // pred_fallthru
      _
    // Predicated region
    $region26: #{tpu_custom_call.1} parent=1 // pred_check
      _
    $region27: #{tpu_custom_call.1} parent=1 // pred_check_branch
      %26 = sbr.rel (0) target = $region29
    $region28: #{tpu_custom_call.1} parent=1 // pred_region
      _
    $region29: #{tpu_custom_call.1} parent=1 // pred_fallthru
      _
    %v28 = vld [vmem:[%s0] sm:$0xff]
    %v29 = vld [vmem:[%s1] sm:$0xf]
    %v30 = vld [vmem:[%s1 + $0x4] sm:$0xf]
    %v31 = vld [vmem:[%s1 + $0x8] sm:$0xf]
    %v32 = vld [vmem:[%s1 + $0xc] sm:$0xf]
    %v33 = vld [vmem:[%s1 + $0x10] sm:$0xf]
    %v34 = vld [vmem:[%s1 + $0x14] sm:$0xf]
    %v35 = vld [vmem:[%s1 + $0x18] sm:$0xf]
    %v36 = vld [vmem:[%s1 + $0x1c] sm:$0xf]
    %v37 = vld [vmem:[%s1 + $0x20] sm:$0xf]
    %v38 = vld [vmem:[%s1 + $0x24] sm:$0xf]
    %v39 = vld [vmem:[%s1 + $0x28] sm:$0xf]
    %v40 = vld [vmem:[%s1 + $0x2c] sm:$0xf]
    %v41 = vld [vmem:[%s1 + $0x30] sm:$0xf]
    %v42 = vld [vmem:[%s1 + $0x34] sm:$0xf]
    %v43 = vld [vmem:[%s1 + $0x38] sm:$0xf]
    %v44 = vld [vmem:[%s1 + $0x3c] sm:$0xf]
    %v45 = vld [vmem:[%s1 + $0x40] sm:$0xf]
    %v46 = vld [vmem:[%s1 + $0x44] sm:$0xf]
    %v47 = vld [vmem:[%s1 + $0x48] sm:$0xf]
    %v48 = vld [vmem:[%s1 + $0x4c] sm:$0xf]
    %v49 = vld [vmem:[%s1 + $0x50] sm:$0xf]
    %v50 = vld [vmem:[%s1 + $0x54] sm:$0xf]
    %v51 = vld [vmem:[%s1 + $0x58] sm:$0xf]
    %v52 = vld [vmem:[%s1 + $0x5c] sm:$0xf]
    %v53 = vld [vmem:[%s1 + $0x60] sm:$0xf]
    %v54 = vld [vmem:[%s1 + $0x64] sm:$0xf]
    %v55 = vld [vmem:[%s1 + $0x68] sm:$0xf]
    %v56 = vld [vmem:[%s1 + $0x6c] sm:$0xf]
    %v57 = vld [vmem:[%s1 + $0x70] sm:$0xf]
    %v58 = vld [vmem:[%s1 + $0x74] sm:$0xf]
    %v59 = vld [vmem:[%s1 + $0x78] sm:$0xf]
    %v60 = vld [vmem:[%s1 + $0x7c] sm:$0xf]
    %v61 = vld [vmem:[%s1 + $0x80] sm:$0xf]
    %v62 = vld [vmem:[%s1 + $0x84] sm:$0xf]
    %v63 = vld [vmem:[%s1 + $0x88] sm:$0xf]
    %v64 = vld [vmem:[%s1 + $0x8c] sm:$0xf]
    %v65 = vld [vmem:[%s1 + $0x90] sm:$0xf]
    %v66 = vld [vmem:[%s1 + $0x94] sm:$0xf]
    %v67 = vld [vmem:[%s1 + $0x98] sm:$0xf]
    %v68 = vld [vmem:[%s1 + $0x9c] sm:$0xf]
    %v69 = vld [vmem:[%s1 + $0xa0] sm:$0xf]
    %v70 = vld [vmem:[%s1 + $0xa4] sm:$0xf]
    %v71 = vld [vmem:[%s1 + $0xa8] sm:$0xf]
    %v72 = vld [vmem:[%s1 + $0xac] sm:$0xf]
    %v73 = vld [vmem:[%s1 + $0xb0] sm:$0xf]
    %v74 = vld [vmem:[%s1 + $0xb4] sm:$0xf]
    %v75 = vld [vmem:[%s1 + $0xb8] sm:$0xf]
    %v76 = vld [vmem:[%s1 + $0xbc] sm:$0xf]
    %v77 = vld [vmem:[%s1 + $0xc0] sm:$0xf]
    %v78 = vld [vmem:[%s1 + $0xc4] sm:$0xf]
    %v79 = vld [vmem:[%s1 + $0xc8] sm:$0xf]
    %v80 = vld [vmem:[%s1 + $0xcc] sm:$0xf]
    %v81 = vld [vmem:[%s1 + $0xd0] sm:$0xf]
    %v82 = vld [vmem:[%s1 + $0xd4] sm:$0xf]
    %v83 = vld [vmem:[%s1 + $0xd8] sm:$0xf]
    %v84 = vld [vmem:[%s1 + $0xdc] sm:$0xf]
    %v85 = vld [vmem:[%s1 + $0xe0] sm:$0xf]
    %v86 = vld [vmem:[%s1 + $0xe4] sm:$0xf]
    %v87 = vld [vmem:[%s1 + $0xe8] sm:$0xf]
    %v88 = vld [vmem:[%s1 + $0xec] sm:$0xf]
    %v89 = vld [vmem:[%s1 + $0xf0] sm:$0xf]
    %v90 = vld [vmem:[%s1 + $0xf4] sm:$0xf]
    %v91 = vld [vmem:[%s1 + $0xf8] sm:$0xf]
    %v92 = vld [vmem:[%s1 + $0xfc] sm:$0xf]
    %v93 = vld [vmem:[%s1 + $0x100] sm:$0xf]
    %v94 = vld [vmem:[%s1 + $0x104] sm:$0xf]
    %v95 = vld [vmem:[%s1 + $0x108] sm:$0xf]
    %v96 = vld [vmem:[%s1 + $0x10c] sm:$0xf]
    %v97 = vld [vmem:[%s1 + $0x110] sm:$0xf]
    %v98 = vld [vmem:[%s1 + $0x114] sm:$0xf]
    %v99 = vld [vmem:[%s1 + $0x118] sm:$0xf]
    %v100 = vld [vmem:[%s1 + $0x11c] sm:$0xf]
    %v101 = vld [vmem:[%s1 + $0x120] sm:$0xf]
    %v102 = vld [vmem:[%s1 + $0x124] sm:$0xf]
    %v103 = vld [vmem:[%s1 + $0x128] sm:$0xf]
    %v104 = vld [vmem:[%s1 + $0x12c] sm:$0xf]
    %v105 = vld [vmem:[%s1 + $0x130] sm:$0xf]
    %v106 = vld [vmem:[%s1 + $0x134] sm:$0xf]
    %v107 = vld [vmem:[%s1 + $0x138] sm:$0xf]
    %v108 = vld [vmem:[%s1 + $0x13c] sm:$0xf]
    %v109 = vld [vmem:[%s1 + $0x140] sm:$0xf]
    %v110 = vld [vmem:[%s1 + $0x144] sm:$0xf]
    %v111 = vld [vmem:[%s1 + $0x148] sm:$0xf]
    %v112 = vld [vmem:[%s1 + $0x14c] sm:$0xf]
    %v113 = vld [vmem:[%s1 + $0x150] sm:$0xf]
    %v114 = vld [vmem:[%s1 + $0x154] sm:$0xf]
    %v115 = vld [vmem:[%s1 + $0x158] sm:$0xf]
    %v116 = vld [vmem:[%s1 + $0x15c] sm:$0xf]
    %v117 = vld [vmem:[%s1 + $0x160] sm:$0xf]
    %v118 = vld [vmem:[%s1 + $0x164] sm:$0xf]
    %v119 = vld [vmem:[%s1 + $0x168] sm:$0xf]
    %v120 = vld [vmem:[%s1 + $0x16c] sm:$0xf]
    %v121 = vld [vmem:[%s1 + $0x170] sm:$0xf]
    %v122 = vld [vmem:[%s1 + $0x174] sm:$0xf]
    %v123 = vld [vmem:[%s1 + $0x178] sm:$0xf]
    %v124 = vld [vmem:[%s1 + $0x17c] sm:$0xf]
    %v125 = vld [vmem:[%s1 + $0x180] sm:$0xf]
    %v126 = vld [vmem:[%s1 + $0x184] sm:$0xf]
    %v127 = vld [vmem:[%s1 + $0x188] sm:$0xf]
    %v128 = vld [vmem:[%s1 + $0x18c] sm:$0xf]
    %v129 = vld [vmem:[%s1 + $0x190] sm:$0xf]
    %v130 = vld [vmem:[%s1 + $0x194] sm:$0xf]
    %v131 = vld [vmem:[%s1 + $0x198] sm:$0xf]
    %v132 = vld [vmem:[%s1 + $0x19c] sm:$0xf]
    %v133 = vld [vmem:[%s1 + $0x1a0] sm:$0xf]
    %v134 = vld [vmem:[%s1 + $0x1a4] sm:$0xf]
    %v135 = vld [vmem:[%s1 + $0x1a8] sm:$0xf]
    %v136 = vld [vmem:[%s1 + $0x1ac] sm:$0xf]
    %v137 = vld [vmem:[%s1 + $0x1b0] sm:$0xf]
    %v138 = vld [vmem:[%s1 + $0x1b4] sm:$0xf]
    %v139 = vld [vmem:[%s1 + $0x1b8] sm:$0xf]
    %v140 = vld [vmem:[%s1 + $0x1bc] sm:$0xf]
    %v141 = vld [vmem:[%s1 + $0x1c0] sm:$0xf]
    %v142 = vld [vmem:[%s1 + $0x1c4] sm:$0xf]
    %v143 = vld [vmem:[%s1 + $0x1c8] sm:$0xf]
    %v144 = vld [vmem:[%s1 + $0x1cc] sm:$0xf]
    %v145 = vld [vmem:[%s1 + $0x1d0] sm:$0xf]
    %v146 = vld [vmem:[%s1 + $0x1d4] sm:$0xf]
    %v147 = vld [vmem:[%s1 + $0x1d8] sm:$0xf]
    %v148 = vld [vmem:[%s1 + $0x1dc] sm:$0xf]
    %v149 = vld [vmem:[%s1 + $0x1e0] sm:$0xf]
    %v150 = vld [vmem:[%s1 + $0x1e4] sm:$0xf]
    %v151 = vld [vmem:[%s1 + $0x1e8] sm:$0xf]
    %v152 = vld [vmem:[%s1 + $0x1ec] sm:$0xf]
    %v153 = vld [vmem:[%s1 + $0x1f0] sm:$0xf]
    %v154 = vld [vmem:[%s1 + $0x1f4] sm:$0xf]
    %v155 = vld [vmem:[%s1 + $0x1f8] sm:$0xf]
    %v156 = vld [vmem:[%s1 + $0x1fc] sm:$0xf]
    %v157 = vld [vmem:[%s2] sm:$0x1]
    %v159 = vlaneseq
    %v160 = vshrl.u32 %v159, 7
    %v161 = vsub.s32 0, %v160
    %v162 = vrot.slane %v157, %v161
    %v165 = vcombine.high %v28, %v28
    %v167 = vunpack.c.l.s4 1966171168
    %v168 = vunpack.c.0.s8 %v167
    %v169 = vlaneseq
    %v170 = vshrl.u32 %v169, 7
    %v171 = vsub.s32 %v168, %v170
    %v172 = vrot.slane %v28, %v171
    %v174 = vunpack.c.l.s4 1966171168
    %v175 = vunpack.c.0.s8 %v174
    %v176 = vlaneseq
    %v177 = vshrl.u32 %v176, 7
    %v178 = vsub.s32 %v175, %v177
    %v179 = vrot.slane %v165, %v178
    %v180 = vcombine.high %v172, %v172
    %v181 = vcombine.high %v179, %v179
    %v183 = vunpack.c.l.s4 1966171168
    %v184 = vunpack.c.0.s8 %v183
    %v185 = vlaneseq
    %v186 = vshrl.u32 %v185, 7
    %v187 = vsub.s32 %v184, %v186
    %v188 = vrot.slane %v172, %v187
    %v190 = vunpack.c.l.s4 1966171168
    %v191 = vunpack.c.0.s8 %v190
    %v192 = vlaneseq
    %v193 = vshrl.u32 %v192, 7
    %v194 = vsub.s32 %v191, %v193
    %v195 = vrot.slane %v179, %v194
    %v197 = vunpack.c.l.s4 1966171168
    %v198 = vunpack.c.0.s8 %v197
    %v199 = vlaneseq
    %v200 = vshrl.u32 %v199, 7
    %v201 = vsub.s32 %v198, %v200
    %v202 = vrot.slane %v180, %v201
    %v204 = vunpack.c.l.s4 1966171168
    %v205 = vunpack.c.0.s8 %v204
    %v206 = vlaneseq
    %v207 = vshrl.u32 %v206, 7
    %v208 = vsub.s32 %v205, %v207
    %v209 = vrot.slane %v181, %v208
    %v210 = vcombine.high %v188, %v188
    %v211 = vcombine.high %v195, %v195
    %v212 = vcombine.high %v202, %v202
    %v213 = vcombine.high %v209, %v209
    %v350 = vunpack.c.l.b16 %v29
    %v351 = vunpack.c.l.b16 %v30
    %v352 = vunpack.c.l.b16 %v31
    %v353 = vunpack.c.l.b16 %v32
    %v354 = vunpack.c.l.b16 %v33
    %v355 = vunpack.c.l.b16 %v34
    %v356 = vunpack.c.l.b16 %v35
    %v357 = vunpack.c.l.b16 %v36
    %v358 = vunpack.c.l.b16 %v37
    %v359 = vunpack.c.l.b16 %v38
    %v360 = vunpack.c.l.b16 %v39
    %v361 = vunpack.c.l.b16 %v40
    %v362 = vunpack.c.l.b16 %v41
    %v363 = vunpack.c.l.b16 %v42
    %v364 = vunpack.c.l.b16 %v43
    %v365 = vunpack.c.l.b16 %v44
    %v366 = vunpack.c.l.b16 %v45
    %v367 = vunpack.c.l.b16 %v46
    %v368 = vunpack.c.l.b16 %v47
    %v369 = vunpack.c.l.b16 %v48
    %v370 = vunpack.c.l.b16 %v49
    %v371 = vunpack.c.l.b16 %v50
    %v372 = vunpack.c.l.b16 %v51
    %v373 = vunpack.c.l.b16 %v52
    %v374 = vunpack.c.l.b16 %v53
    %v375 = vunpack.c.l.b16 %v54
    %v376 = vunpack.c.l.b16 %v55
    %v377 = vunpack.c.l.b16 %v56
    %v378 = vunpack.c.l.b16 %v57
    %v379 = vunpack.c.l.b16 %v58
    %v380 = vunpack.c.l.b16 %v59
    %v381 = vunpack.c.l.b16 %v60
    %v382 = vunpack.c.l.b16 %v61
    %v383 = vunpack.c.l.b16 %v62
    %v384 = vunpack.c.l.b16 %v63
    %v385 = vunpack.c.l.b16 %v64
    %v386 = vunpack.c.l.b16 %v65
    %v387 = vunpack.c.l.b16 %v66
    %v388 = vunpack.c.l.b16 %v67
    %v389 = vunpack.c.l.b16 %v68
    %v390 = vunpack.c.l.b16 %v69
    %v391 = vunpack.c.l.b16 %v70
    %v392 = vunpack.c.l.b16 %v71
    %v393 = vunpack.c.l.b16 %v72
    %v394 = vunpack.c.l.b16 %v73
    %v395 = vunpack.c.l.b16 %v74
    %v396 = vunpack.c.l.b16 %v75
    %v397 = vunpack.c.l.b16 %v76
    %v398 = vunpack.c.l.b16 %v77
    %v399 = vunpack.c.l.b16 %v78
    %v400 = vunpack.c.l.b16 %v79
    %v401 = vunpack.c.l.b16 %v80
    %v402 = vunpack.c.l.b16 %v81
    %v403 = vunpack.c.l.b16 %v82
    %v404 = vunpack.c.l.b16 %v83
    %v405 = vunpack.c.l.b16 %v84
    %v406 = vunpack.c.l.b16 %v85
    %v407 = vunpack.c.l.b16 %v86
    %v408 = vunpack.c.l.b16 %v87
    %v409 = vunpack.c.l.b16 %v88
    %v410 = vunpack.c.l.b16 %v89
    %v411 = vunpack.c.l.b16 %v90
    %v412 = vunpack.c.l.b16 %v91
    %v413 = vunpack.c.l.b16 %v92
    %v414 = vunpack.c.l.b16 %v93
    %v415 = vunpack.c.l.b16 %v94
    %v416 = vunpack.c.l.b16 %v95
    %v417 = vunpack.c.l.b16 %v96
    %v418 = vunpack.c.l.b16 %v97
    %v419 = vunpack.c.l.b16 %v98
    %v420 = vunpack.c.l.b16 %v99
    %v421 = vunpack.c.l.b16 %v100
    %v422 = vunpack.c.l.b16 %v101
    %v423 = vunpack.c.l.b16 %v102
    %v424 = vunpack.c.l.b16 %v103
    %v425 = vunpack.c.l.b16 %v104
    %v426 = vunpack.c.l.b16 %v105
    %v427 = vunpack.c.l.b16 %v106
    %v428 = vunpack.c.l.b16 %v107
    %v429 = vunpack.c.l.b16 %v108
    %v430 = vunpack.c.l.b16 %v109
    %v431 = vunpack.c.l.b16 %v110
    %v432 = vunpack.c.l.b16 %v111
    %v433 = vunpack.c.l.b16 %v112
    %v434 = vunpack.c.l.b16 %v113
    %v435 = vunpack.c.l.b16 %v114
    %v436 = vunpack.c.l.b16 %v115
    %v437 = vunpack.c.l.b16 %v116
    %v438 = vunpack.c.l.b16 %v117
    %v439 = vunpack.c.l.b16 %v118
    %v440 = vunpack.c.l.b16 %v119
    %v441 = vunpack.c.l.b16 %v120
    %v442 = vunpack.c.l.b16 %v121
    %v443 = vunpack.c.l.b16 %v122
    %v444 = vunpack.c.l.b16 %v123
    %v445 = vunpack.c.l.b16 %v124
    %v446 = vunpack.c.l.b16 %v125
    %v447 = vunpack.c.l.b16 %v126
    %v448 = vunpack.c.l.b16 %v127
    %v449 = vunpack.c.l.b16 %v128
    %v450 = vunpack.c.l.b16 %v129
    %v451 = vunpack.c.l.b16 %v130
    %v452 = vunpack.c.l.b16 %v131
    %v453 = vunpack.c.l.b16 %v132
    %v454 = vunpack.c.l.b16 %v133
    %v455 = vunpack.c.l.b16 %v134
    %v456 = vunpack.c.l.b16 %v135
    %v457 = vunpack.c.l.b16 %v136
    %v458 = vunpack.c.l.b16 %v137
    %v459 = vunpack.c.l.b16 %v138
    %v460 = vunpack.c.l.b16 %v139
    %v461 = vunpack.c.l.b16 %v140
    %v462 = vunpack.c.l.b16 %v141
    %v463 = vunpack.c.l.b16 %v142
    %v464 = vunpack.c.l.b16 %v143
    %v465 = vunpack.c.l.b16 %v144
    %v466 = vunpack.c.l.b16 %v145
    %v467 = vunpack.c.l.b16 %v146
    %v468 = vunpack.c.l.b16 %v147
    %v469 = vunpack.c.l.b16 %v148
    %v470 = vunpack.c.l.b16 %v149
    %v471 = vunpack.c.l.b16 %v150
    %v472 = vunpack.c.l.b16 %v151
    %v473 = vunpack.c.l.b16 %v152
    %v474 = vunpack.c.l.b16 %v153
    %v475 = vunpack.c.l.b16 %v154
    %v476 = vunpack.c.l.b16 %v155
    %v477 = vunpack.c.l.b16 %v156
    %v478 = vpack.c.b16 %v351, %v350
    %v479 = vpack.c.b16 %v353, %v352
    %v480 = vpack.c.b16 %v355, %v354
    %v481 = vpack.c.b16 %v357, %v356
    %v482 = vpack.c.b16 %v359, %v358
    %v483 = vpack.c.b16 %v361, %v360
    %v484 = vpack.c.b16 %v363, %v362
    %v485 = vpack.c.b16 %v365, %v364
    %v486 = vpack.c.b16 %v367, %v366
    %v487 = vpack.c.b16 %v369, %v368
    %v488 = vpack.c.b16 %v371, %v370
    %v489 = vpack.c.b16 %v373, %v372
    %v490 = vpack.c.b16 %v375, %v374
    %v491 = vpack.c.b16 %v377, %v376
    %v492 = vpack.c.b16 %v379, %v378
    %v493 = vpack.c.b16 %v381, %v380
    %v494 = vpack.c.b16 %v383, %v382
    %v495 = vpack.c.b16 %v385, %v384
    %v496 = vpack.c.b16 %v387, %v386
    %v497 = vpack.c.b16 %v389, %v388
    %v498 = vpack.c.b16 %v391, %v390
    %v499 = vpack.c.b16 %v393, %v392
    %v500 = vpack.c.b16 %v395, %v394
    %v501 = vpack.c.b16 %v397, %v396
    %v502 = vpack.c.b16 %v399, %v398
    %v503 = vpack.c.b16 %v401, %v400
    %v504 = vpack.c.b16 %v403, %v402
    %v505 = vpack.c.b16 %v405, %v404
    %v506 = vpack.c.b16 %v407, %v406
    %v507 = vpack.c.b16 %v409, %v408
    %v508 = vpack.c.b16 %v411, %v410
    %v509 = vpack.c.b16 %v413, %v412
    %v510 = vpack.c.b16 %v415, %v414
    %v511 = vpack.c.b16 %v417, %v416
    %v512 = vpack.c.b16 %v419, %v418
    %v513 = vpack.c.b16 %v421, %v420
    %v514 = vpack.c.b16 %v423, %v422
    %v515 = vpack.c.b16 %v425, %v424
    %v516 = vpack.c.b16 %v427, %v426
    %v517 = vpack.c.b16 %v429, %v428
    %v518 = vpack.c.b16 %v431, %v430
    %v519 = vpack.c.b16 %v433, %v432
    %v520 = vpack.c.b16 %v435, %v434
    %v521 = vpack.c.b16 %v437, %v436
    %v522 = vpack.c.b16 %v439, %v438
    %v523 = vpack.c.b16 %v441, %v440
    %v524 = vpack.c.b16 %v443, %v442
    %v525 = vpack.c.b16 %v445, %v444
    %v526 = vpack.c.b16 %v447, %v446
    %v527 = vpack.c.b16 %v449, %v448
    %v528 = vpack.c.b16 %v451, %v450
    %v529 = vpack.c.b16 %v453, %v452
    %v530 = vpack.c.b16 %v455, %v454
    %v531 = vpack.c.b16 %v457, %v456
    %v532 = vpack.c.b16 %v459, %v458
    %v533 = vpack.c.b16 %v461, %v460
    %v534 = vpack.c.b16 %v463, %v462
    %v535 = vpack.c.b16 %v465, %v464
    %v536 = vpack.c.b16 %v467, %v466
    %v537 = vpack.c.b16 %v469, %v468
    %v538 = vpack.c.b16 %v471, %v470
    %v539 = vpack.c.b16 %v473, %v472
    %v540 = vpack.c.b16 %v475, %v474
    %v541 = vpack.c.b16 %v477, %v476
    %606 = vmatprep.subr.bf16.mxu0 0
    %607 = vmatpush1.bf16.msra.mxu0 %v478
    %608 = vmatprep.subr.bf16.mxu0 0
    %609 = vmatpush1.bf16.msra.mxu0 %v479
    %610 = vmatprep.subr.bf16.mxu0 0
    %611 = vmatpush1.bf16.msra.mxu0 %v480
    %612 = vmatprep.subr.bf16.mxu0 0
    %613 = vmatpush1.bf16.msra.mxu0 %v481
    %614 = vmatprep.subr.bf16.mxu0 0
    %615 = vmatpush1.bf16.msra.mxu0 %v482
    %616 = vmatprep.subr.bf16.mxu0 0
    %617 = vmatpush1.bf16.msra.mxu0 %v483
    %618 = vmatprep.subr.bf16.mxu0 0
    %619 = vmatpush1.bf16.msra.mxu0 %v484
    %620 = vmatprep.subr.bf16.mxu0 0
    %621 = vmatpush1.bf16.msra.mxu0 %v485
    %622 = vmatprep.subr.bf16.mxu0 0
    %623 = vmatpush1.bf16.msra.mxu0 %v486
    %624 = vmatprep.subr.bf16.mxu0 0
    %625 = vmatpush1.bf16.msra.mxu0 %v487
    %626 = vmatprep.subr.bf16.mxu0 0
    %627 = vmatpush1.bf16.msra.mxu0 %v488
    %628 = vmatprep.subr.bf16.mxu0 0
    %629 = vmatpush1.bf16.msra.mxu0 %v489
    %630 = vmatprep.subr.bf16.mxu0 0
    %631 = vmatpush1.bf16.msra.mxu0 %v490
    %632 = vmatprep.subr.bf16.mxu0 0
    %633 = vmatpush1.bf16.msra.mxu0 %v491
    %634 = vmatprep.subr.bf16.mxu0 0
    %635 = vmatpush1.bf16.msra.mxu0 %v492
    %636 = vmatprep.subr.bf16.mxu0 0
    %637 = vmatpush1.bf16.msra.mxu0 %v493
    %638 = vmatprep.mubr.bf16.mxu0 %v202
    %639 = vmatmul.mubr.bf16.gmra.mrb[0].mxu0 %v188
    %v640 = vpop.f32.mrb[0].mxu0
    %v641 = vadd.f32 %v162, %v640
    %v642 = vpop.f32.mrb[0].mxu0
    %v643 = vpop.f32.mrb[0].mxu0
    %v644 = vpop.f32.mrb[0].mxu0
    %645 = vdwg.mxu0
    %646 = vmatprep.subr.bf16.mxu0 0
    %647 = vmatpush1.bf16.msra.mxu0 %v494
    %648 = vmatprep.subr.bf16.mxu0 0
    %649 = vmatpush1.bf16.msra.mxu0 %v495
    %650 = vmatprep.subr.bf16.mxu0 0
    %651 = vmatpush1.bf16.msra.mxu0 %v496
    %652 = vmatprep.subr.bf16.mxu0 0
    %653 = vmatpush1.bf16.msra.mxu0 %v497
    %654 = vmatprep.subr.bf16.mxu0 0
    %655 = vmatpush1.bf16.msra.mxu0 %v498
    %656 = vmatprep.subr.bf16.mxu0 0
    %657 = vmatpush1.bf16.msra.mxu0 %v499
    %658 = vmatprep.subr.bf16.mxu0 0
    %659 = vmatpush1.bf16.msra.mxu0 %v500
    %660 = vmatprep.subr.bf16.mxu0 0
    %661 = vmatpush1.bf16.msra.mxu0 %v501
    %662 = vmatprep.subr.bf16.mxu0 0
    %663 = vmatpush1.bf16.msra.mxu0 %v502
    %664 = vmatprep.subr.bf16.mxu0 0
    %665 = vmatpush1.bf16.msra.mxu0 %v503
    %666 = vmatprep.subr.bf16.mxu0 0
    %667 = vmatpush1.bf16.msra.mxu0 %v504
    %668 = vmatprep.subr.bf16.mxu0 0
    %669 = vmatpush1.bf16.msra.mxu0 %v505
    %670 = vmatprep.subr.bf16.mxu0 0
    %671 = vmatpush1.bf16.msra.mxu0 %v506
    %672 = vmatprep.subr.bf16.mxu0 0
    %673 = vmatpush1.bf16.msra.mxu0 %v507
    %674 = vmatprep.subr.bf16.mxu0 0
    %675 = vmatpush1.bf16.msra.mxu0 %v508
    %676 = vmatprep.subr.bf16.mxu0 0
    %677 = vmatpush1.bf16.msra.mxu0 %v509
    %678 = vmatprep.mubr.bf16.mxu0 %v212
    %679 = vmatmul.mubr.bf16.gmra.mrb[0].mxu0 %v210
    %v680 = vpop.f32.mrb[0].mxu0
    %v681 = vadd.f32 %v641, %v680
    %v682 = vpop.f32.mrb[0].mxu0
    %v683 = vpop.f32.mrb[0].mxu0
    %v684 = vpop.f32.mrb[0].mxu0
    %685 = vdwg.mxu0
    %686 = vmatprep.subr.bf16.mxu0 0
    %687 = vmatpush1.bf16.msra.mxu0 %v510
    %688 = vmatprep.subr.bf16.mxu0 0
    %689 = vmatpush1.bf16.msra.mxu0 %v511
    %690 = vmatprep.subr.bf16.mxu0 0
    %691 = vmatpush1.bf16.msra.mxu0 %v512
    %692 = vmatprep.subr.bf16.mxu0 0
    %693 = vmatpush1.bf16.msra.mxu0 %v513
    %694 = vmatprep.subr.bf16.mxu0 0
    %695 = vmatpush1.bf16.msra.mxu0 %v514
    %696 = vmatprep.subr.bf16.mxu0 0
    %697 = vmatpush1.bf16.msra.mxu0 %v515
    %698 = vmatprep.subr.bf16.mxu0 0
    %699 = vmatpush1.bf16.msra.mxu0 %v516
    %700 = vmatprep.subr.bf16.mxu0 0
    %701 = vmatpush1.bf16.msra.mxu0 %v517
    %702 = vmatprep.subr.bf16.mxu0 0
    %703 = vmatpush1.bf16.msra.mxu0 %v518
    %704 = vmatprep.subr.bf16.mxu0 0
    %705 = vmatpush1.bf16.msra.mxu0 %v519
    %706 = vmatprep.subr.bf16.mxu0 0
    %707 = vmatpush1.bf16.msra.mxu0 %v520
    %708 = vmatprep.subr.bf16.mxu0 0
    %709 = vmatpush1.bf16.msra.mxu0 %v521
    %710 = vmatprep.subr.bf16.mxu0 0
    %711 = vmatpush1.bf16.msra.mxu0 %v522
    %712 = vmatprep.subr.bf16.mxu0 0
    %713 = vmatpush1.bf16.msra.mxu0 %v523
    %714 = vmatprep.subr.bf16.mxu0 0
    %715 = vmatpush1.bf16.msra.mxu0 %v524
    %716 = vmatprep.subr.bf16.mxu0 0
    %717 = vmatpush1.bf16.msra.mxu0 %v525
    %718 = vmatprep.mubr.bf16.mxu0 %v209
    %719 = vmatmul.mubr.bf16.gmra.mrb[0].mxu0 %v195
    %v720 = vpop.f32.mrb[0].mxu0
    %v721 = vadd.f32 %v681, %v720
    %v722 = vpop.f32.mrb[0].mxu0
    %v723 = vpop.f32.mrb[0].mxu0
    %v724 = vpop.f32.mrb[0].mxu0
    %725 = vdwg.mxu0
    %726 = vmatprep.subr.bf16.mxu0 0
    %727 = vmatpush1.bf16.msra.mxu0 %v526
    %728 = vmatprep.subr.bf16.mxu0 0
    %729 = vmatpush1.bf16.msra.mxu0 %v527
    %730 = vmatprep.subr.bf16.mxu0 0
    %731 = vmatpush1.bf16.msra.mxu0 %v528
    %732 = vmatprep.subr.bf16.mxu0 0
    %733 = vmatpush1.bf16.msra.mxu0 %v529
    %734 = vmatprep.subr.bf16.mxu0 0
    %735 = vmatpush1.bf16.msra.mxu0 %v530
    %736 = vmatprep.subr.bf16.mxu0 0
    %737 = vmatpush1.bf16.msra.mxu0 %v531
    %738 = vmatprep.subr.bf16.mxu0 0
    %739 = vmatpush1.bf16.msra.mxu0 %v532
    %740 = vmatprep.subr.bf16.mxu0 0
    %741 = vmatpush1.bf16.msra.mxu0 %v533
    %742 = vmatprep.subr.bf16.mxu0 0
    %743 = vmatpush1.bf16.msra.mxu0 %v534
    %744 = vmatprep.subr.bf16.mxu0 0
    %745 = vmatpush1.bf16.msra.mxu0 %v535
    %746 = vmatprep.subr.bf16.mxu0 0
    %747 = vmatpush1.bf16.msra.mxu0 %v536
    %748 = vmatprep.subr.bf16.mxu0 0
    %749 = vmatpush1.bf16.msra.mxu0 %v537
    %750 = vmatprep.subr.bf16.mxu0 0
    %751 = vmatpush1.bf16.msra.mxu0 %v538
    %752 = vmatprep.subr.bf16.mxu0 0
    %753 = vmatpush1.bf16.msra.mxu0 %v539
    %754 = vmatprep.subr.bf16.mxu0 0
    %755 = vmatpush1.bf16.msra.mxu0 %v540
    %756 = vmatprep.subr.bf16.mxu0 0
    %757 = vmatpush1.bf16.msra.mxu0 %v541
    %758 = vmatprep.mubr.bf16.mxu0 %v213
    %759 = vmatmul.mubr.bf16.gmra.mrb[0].mxu0 %v211
    %v760 = vpop.f32.mrb[0].mxu0
    %v761 = vadd.f32 %v721, %v760
    %v762 = vpop.f32.mrb[0].mxu0
    %v763 = vpop.f32.mrb[0].mxu0
    %v764 = vpop.f32.mrb[0].mxu0
    %765 = vdwg.mxu0
    %v766 = vmax.f32 %v761, 0.0
    %v767 = vld [vmem:[%s5] sm:$0x3]
    %v768 = vmul.f32 %v766, %v767
    %v769 = vpack.c.bf16 %v768, %v768
    %v770 = vld [vmem:[%s3] sm:$0xf]
    %v771 = vld [vmem:[%s3 + $0x4] sm:$0xf]
    %v772 = vld [vmem:[%s3 + $0x8] sm:$0xf]
    %v773 = vld [vmem:[%s3 + $0xc] sm:$0xf]
    %v774 = vld [vmem:[%s4] sm:$0x1]
    %v776 = vlaneseq
    %v777 = vshrl.u32 %v776, 7
    %v778 = vsub.s32 0, %v777
    %v779 = vrot.slane %v774, %v778
    %v785 = vunpack.c.l.b16 %v770
    %v786 = vunpack.c.l.b16 %v771
    %v787 = vunpack.c.l.b16 %v772
    %v788 = vunpack.c.l.b16 %v773
    %v789 = vpack.c.b16 %v786, %v785
    %v790 = vpack.c.b16 %v788, %v787
    %vm793 = vcmask 261120
    %v795 = vsel %vm793, %v769, 0
    %797 = vmatprep.subr.bf16.mxu0 0
    %798 = vmatpush1.bf16.msra.mxu0 %v789
    %799 = vmatprep.subr.bf16.mxu0 0
    %800 = vmatpush1.bf16.msra.mxu0 %v790
    %801 = vmatprep.subr.bf16.mxu0 0
    %802 = vmatpush1.bf16.msra.mxu0 0
    %803 = vmatprep.subr.bf16.mxu0 0
    %804 = vmatpush1.bf16.msra.mxu0 0
    %805 = vmatprep.subr.bf16.mxu0 0
    %806 = vmatpush1.bf16.msra.mxu0 0
    %807 = vmatprep.subr.bf16.mxu0 0
    %808 = vmatpush1.bf16.msra.mxu0 0
    %809 = vmatprep.subr.bf16.mxu0 0
    %810 = vmatpush1.bf16.msra.mxu0 0
    %811 = vmatprep.subr.bf16.mxu0 0
    %812 = vmatpush1.bf16.msra.mxu0 0
    %813 = vmatprep.subr.bf16.mxu0 0
    %814 = vmatpush1.bf16.msra.mxu0 0
    %815 = vmatprep.subr.bf16.mxu0 0
    %816 = vmatpush1.bf16.msra.mxu0 0
    %817 = vmatprep.subr.bf16.mxu0 0
    %818 = vmatpush1.bf16.msra.mxu0 0
    %819 = vmatprep.subr.bf16.mxu0 0
    %820 = vmatpush1.bf16.msra.mxu0 0
    %821 = vmatprep.subr.bf16.mxu0 0
    %822 = vmatpush1.bf16.msra.mxu0 0
    %823 = vmatprep.subr.bf16.mxu0 0
    %824 = vmatpush1.bf16.msra.mxu0 0
    %825 = vmatprep.subr.bf16.mxu0 0
    %826 = vmatpush1.bf16.msra.mxu0 0
    %827 = vmatprep.subr.bf16.mxu0 0
    %828 = vmatpush1.bf16.msra.mxu0 0
    %829 = vmatprep.mubr.bf16.mxu0 0
    %830 = vmatmul.mubr.bf16.gmra.mrb[0].mxu0 %v795
    %v831 = vpop.f32.mrb[0].mxu0
    %v832 = vadd.f32 %v779, %v831
    %v833 = vpop.f32.mrb[0].mxu0
    %v834 = vpop.f32.mrb[0].mxu0
    %v835 = vpop.f32.mrb[0].mxu0
    %836 = vdwg.mxu0
    %v837 = vmul.f32 %v832, 1.442695
    %v838 = vpow.pop %v837
    %v839 = vld [vmem:[%s6] sm:$0x3]
    %841 = vrot.lane.b32.xlu0 %v838, 112
    %v842 = vpop.permute.xlu0 %841
    %v844 = vmul.f32 %v839, %v842
    %v845 = vadd.f32 %v832, %v844
    %847 = vrot.lane.b32.xlu0 %v832, 16
    %v848 = vpop.permute.xlu0 %847
    %850 = vrot.lane.b32.xlu0 %v838, 16
    %v851 = vpop.permute.xlu0 %850
    %vm853 = vcmask 130048
    %v854 = vsel %vm853, %v845, %v848
    %v855 = vsel %vm793, %v854, %v851
    %vm856 = vcmask 386048
    %857 = vst.msk [vmem:[#allocation2] sm:$0x3] %vm856, %v855
    // Predicated region
    $region30: #{tpu_custom_call.1} parent=1 // pred_check
      _
    $region31: #{tpu_custom_call.1} parent=1 // pred_check_branch
      %859 = sbr.rel (0) target = $region33
    $region32: #{tpu_custom_call.1} parent=1 // pred_region
      %s861 = ssub.s32 32, 32
      %862 = vsyncadd [#allocation3], %s861
      %s864 = sshll.u32 [#allocation2], 4
      %s865 = int_to_ptr.vmem [resolvable:$true] %s864
      %867 = dma.vmem_to_hbm [thread:$0]  %s865, 32, %s7, [#allocation3]
    $region33: #{tpu_custom_call.1} parent=1 // pred_fallthru
      _
    // Predicated region
    $region34: #{tpu_custom_call.1} parent=1 // pred_check
      _
    $region35: #{tpu_custom_call.1} parent=1 // pred_check_branch
      %869 = sbr.rel (0) target = $region37
    $region36: #{tpu_custom_call.1} parent=1 // pred_region
      %870 = dma.done [#allocation3], 32
    $region37: #{tpu_custom_call.1} parent=1 // pred_fallthru
      _
    %871 = vsyncpa [#allocation3], 1

</llo_original>
